<compile_context>
chip_gen: v7x
topology: tpu7x:2x2x1
jax: 0.10.0
libtpu: 0.0.40
codegen_flags: <defaults>
</compile_context>

<pallas_src>
import functools

import jax
import jax.numpy as jnp
from jax.experimental import pallas as pl
from jax.experimental.pallas import tpu as pltpu

EPS = 1e-5


def _round_up(x, m):
    return (x + m - 1) // m * m


# ---------------------------------------------------------------------------
# Kernel A: (Cout, K) @ (K, TM) matmul + ReLU + folded BN.
# Used by stride-2 layers whose taps are materialized (transposed) im2col.
# ---------------------------------------------------------------------------
def _matmul_relu_bn_kernel(t_ref, w_ref, sb_ref, o_ref):
    # t_ref: (1, K, TM)   w_ref: (Cout, K)   sb_ref: (2, Cout, 1)   o_ref: (1, Cout, TM)
    y = jnp.dot(w_ref[...], t_ref[0], preferred_element_type=jnp.float32)
    y = jnp.maximum(y, 0.0)                      # conv -> relu -> bn
    y = y * sb_ref[0] + sb_ref[1]                # folded BatchNorm (inference stats)
    o_ref[0] = y.astype(o_ref.dtype)


def conv_relu_bn_im2col(x, w_hwio, scale, shift, *, stride, compute_dtype, tm):
    """3x3 conv (pad=1), any stride, via wrapper-side transposed im2col."""
    n, c, h, w = x.shape
    cout = w_hwio.shape[-1]
    ho = (h + 2 - 3) // stride + 1
    wo = (w + 2 - 3) // stride + 1
    m = ho * wo
    k = 9 * c

    xp = jnp.pad(x, ((0, 0), (0, 0), (1, 1), (1, 1))).astype(compute_dtype)
    slabs = []
    for dh in range(3):
        for dw in range(3):
            slabs.append(xp[:, :, dh:dh + stride * (ho - 1) + 1:stride,
                            dw:dw + stride * (wo - 1) + 1:stride])
    t = jnp.stack(slabs, axis=1).reshape(n, k, m)      # K order: (dh, dw, cin)

    k_pad = _round_up(k, 8)                            # 27 -> 32 for Cin=3
    tm = min(tm, _round_up(m, 128))
    assert tm % 128 == 0
    m_pad = _round_up(m, tm)
    t = jnp.pad(t, ((0, 0), (0, k_pad - k), (0, m_pad - m)))

    w2 = jnp.transpose(w_hwio.reshape(k, cout))        # (Cout, K), (dh,dw,cin)-major
    w2 = jnp.pad(w2, ((0, 0), (0, k_pad - k))).astype(compute_dtype)
    sb = jnp.stack([scale, shift]).reshape(2, cout, 1).astype(jnp.float32)

    out = pl.pallas_call(
        _matmul_relu_bn_kernel,
        out_shape=jax.ShapeDtypeStruct((n, cout, m_pad), compute_dtype),
        grid_spec=pltpu.PrefetchScalarGridSpec(
            num_scalar_prefetch=0,
            grid=(n, m_pad // tm),
            in_specs=[
                pl.BlockSpec((1, k_pad, tm), lambda b, i: (b, 0, i)),
                pl.BlockSpec((cout, k_pad), lambda b, i: (0, 0)),
                pl.BlockSpec((2, cout, 1), lambda b, i: (0, 0, 0)),
            ],
            out_specs=pl.BlockSpec((1, cout, tm), lambda b, i: (b, 0, i)),
        ),
        compiler_params=pltpu.CompilerParams(
            dimension_semantics=("parallel", "parallel")),
    )(t, w2, sb)

    return out[:, :, :m].reshape(n, cout, ho, wo)


# ---------------------------------------------------------------------------
# Kernel B: fused stride-1 layer.  In-VMEM im2col from a manually DMA'd,
# double-buffered pixel strip of the padded (channels-major) flat input.
# ---------------------------------------------------------------------------
def _fused_s1_kernel(xf_ref, w_ref, sb_ref, o_ref, strip, sem, *,
                     offs, tm, strip_len):
    # xf_ref: (N, C, L) in HBM (pl.ANY)      w_ref: (Cout, 9C)
    # sb_ref: (2, Cout, 1)                   o_ref: (1, Cout, TM)
    # strip:  VMEM (2, C, STRIP)             sem:   DMA semaphores (2,)
    b = pl.program_id(0)
    i = pl.program_id(1)
    nt = pl.num_programs(1)
    slot = i % 2

    def start_fetch(tile_idx, slot_idx):
        pltpu.make_async_copy(
            xf_ref.at[b, :, pl.ds(tile_idx * tm, strip_len)],
            strip.at[slot_idx],
            sem.at[slot_idx],
        ).start()

    # First tile of each image fetches its own strip (no cross-image carry,
    # so the batch grid axis can stay megacore-parallel).
    @pl.when(i == 0)
    def _():
        start_fetch(0, 0)

    # Wait for this tile's strip (descriptor shape must match the fetch).
    pltpu.make_async_copy(
        xf_ref.at[b, :, pl.ds(0, strip_len)],
        strip.at[slot],
        sem.at[slot],
    ).wait()

    # Prefetch the next tile's strip into the other slot (overlaps compute).
    @pl.when(i + 1 < nt)
    def _():
        start_fetch(i + 1, 1 - slot)

    # In-VMEM im2col: 9 lane-offset views of the strip, concatenated along the
    # channel (sublane) axis -> (9C, TM) rhs for one deep-K MXU matmul.
    taps = jnp.concatenate(
        [strip[slot, :, pl.ds(off, tm)] for off in offs], axis=0)
    y = jnp.dot(w_ref[...], taps, preferred_element_type=jnp.float32)
    y = jnp.maximum(y, 0.0)                      # conv -> relu -> bn
    y = y * sb_ref[0] + sb_ref[1]                # folded BatchNorm (inference stats)
    o_ref[0] = y.astype(o_ref.dtype)


def conv_relu_bn_s1_fused(x, w_hwio, scale, shift, *, compute_dtype, tm):
    """3x3 conv (pad=1, stride=1) fused with in-kernel im2col."""
    n, c, h, w = x.shape
    cout = w_hwio.shape[-1]
    wp = w + 2                              # padded row width
    m_ext = h * wp                          # "extended" output: full padded width,
    #                                         2 garbage columns/row sliced off below
    tm = min(tm, _round_up(m_ext, 128))
    assert tm % 128 == 0
    m_pad = _round_up(m_ext, tm)
    nt = m_pad // tm
    strip_len = tm + 2 * wp + 2             # halo needed by the 9 taps
    l_in = (nt - 1) * tm + strip_len        # max flat index the DMAs may touch

    # Padded, flattened, channels-major input (single fused XLA copy).
    xp = jnp.pad(x, ((0, 0), (0, 0), (1, 1), (1, 1))).astype(compute_dtype)
    xf = xp.reshape(n, c, (h + 2) * wp)
    xf = jnp.pad(xf, ((0, 0), (0, 0), (0, l_in - (h + 2) * wp)))

    k = 9 * c
    w2 = jnp.transpose(w_hwio.reshape(k, cout)).astype(compute_dtype)  # (Cout, 9C)
    sb = jnp.stack([scale, shift]).reshape(2, cout, 1).astype(jnp.float32)

    # Tap offsets: ext output pixel o reads padded flat pixel o + dh*Wp + dw.
    offs = tuple(dh * wp + dw for dh in range(3) for dw in range(3))
    kernel = functools.partial(_fused_s1_kernel, offs=offs, tm=tm,
                               strip_len=strip_len)

    out = pl.pallas_call(
        kernel,
        out_shape=jax.ShapeDtypeStruct((n, cout, m_pad), compute_dtype),
        grid_spec=pltpu.PrefetchScalarGridSpec(
            num_scalar_prefetch=0,
            grid=(n, nt),
            in_specs=[
                pl.BlockSpec(memory_space=pl.ANY),               # flat padded input
                pl.BlockSpec((cout, k), lambda b, i: (0, 0)),
                pl.BlockSpec((2, cout, 1), lambda b, i: (0, 0, 0)),
            ],
            out_specs=pl.BlockSpec((1, cout, tm), lambda b, i: (b, 0, i)),
            scratch_shapes=[
                pltpu.VMEM((2, c, strip_len), compute_dtype),    # double-buffered strip
                pltpu.SemaphoreType.DMA((2,)),
            ],
        ),
        compiler_params=pltpu.CompilerParams(
            dimension_semantics=("parallel", "arbitrary")),
    )(xf, w2, sb)

    out = out[:, :, :m_ext].reshape(n, cout, h, wp)[:, :, :, :w]
    return out


# ---------------------------------------------------------------------------
# DetailBranch:
#   S1(3->64 s2, 64->64 s1)  S2(64->64 s2, x2 s1)  S3(64->128 s2, x2 s1)
# ---------------------------------------------------------------------------
_LAYER_SPECS = [
    (3, 64, 2), (64, 64, 1),                     # S1
    (64, 64, 2), (64, 64, 1), (64, 64, 1),       # S2
    (64, 128, 2), (128, 128, 1), (128, 128, 1),  # S3
]


def init_detail_branch_params(key):
    params = []
    for (cin, cout, stride) in _LAYER_SPECS:
        key, wk, gk, bk, mk, vk = jax.random.split(key, 6)
        std = (2.0 / (9 * cin)) ** 0.5
        w = jax.random.normal(wk, (3, 3, cin, cout), jnp.float32) * std  # HWIO
        # Non-identity BN parameters so the folded scale/shift path is exercised.
        gamma = 1.0 + 0.1 * jax.random.normal(gk, (cout,), jnp.float32)
        beta = 0.1 * jax.random.normal(bk, (cout,), jnp.float32)
        mean = 0.1 * jax.random.normal(mk, (cout,), jnp.float32)
        var = 1.0 + 0.1 * jax.random.uniform(vk, (cout,), jnp.float32)
        params.append(dict(w=w, gamma=gamma, beta=beta, mean=mean, var=var,
                           stride=stride))
    return params


def _folded_bn(p):
    scale = p["gamma"] / jnp.sqrt(p["var"] + EPS)
    shift = p["beta"] - p["mean"] * scale
    return scale, shift


def detail_branch_forward(x_nchw, params, *, compute_dtype=jnp.bfloat16,
                          fused_tm=None, im2col_tm=None):
    """Pallas implementation.  Input/output: NCHW like the PyTorch module."""
    x = x_nchw
    for p in params:
        cin = p["w"].shape[2]
        scale, shift = _folded_bn(p)
        if p["stride"] != 1:
            # Cin=3 first layer: K_pad=32 -> big TM to amortize per-step overhead.
            tm = im2col_tm if im2col_tm is not None else (8192 if cin <= 8 else 2048)
            x = conv_relu_bn_im2col(x, p["w"], scale, shift, stride=p["stride"],
                                    compute_dtype=compute_dtype, tm=tm)
        else:
            # K=1152 layers use smaller TM to stay VMEM-safe on v5e/v7x defaults.
            tm = fused_tm if fused_tm is not None else (4096 if cin <= 64 else 2048)
            x = conv_relu_bn_s1_fused(x, p["w"], scale, shift,
                                      compute_dtype=compute_dtype, tm=tm)
    return x.astype(jnp.float32)


def detail_branch_reference(x_nchw, params, compute_dtype=jnp.float32):
    """Pure-JAX reference (lax.conv) used only for correctness checks."""
    y = x_nchw.astype(jnp.float32)
    for p in params:
        w_oihw = jnp.transpose(p["w"], (3, 2, 0, 1)).astype(compute_dtype)
        yc = jax.lax.conv_general_dilated(
            y.astype(compute_dtype), w_oihw,
            window_strides=(p["stride"], p["stride"]),
            padding=((1, 1), (1, 1)),
            dimension_numbers=("NCHW", "OIHW", "NCHW"),
            preferred_element_type=jnp.float32)
        yr = jnp.maximum(yc, 0.0)
        scale, shift = _folded_bn(p)
        y = yr * scale[None, :, None, None] + shift[None, :, None, None]
        # Match the kernel path, which stores intermediates in compute_dtype.
        y = y.astype(compute_dtype).astype(jnp.float32)
    return y


if __name__ == "__main__":
    key = jax.random.PRNGKey(0)
    key, xkey, xkey2 = jax.random.split(key, 3)
    params = init_detail_branch_params(key)

    # Small deterministic input (NCHW), matching the module's expected layout.
    x = jax.random.normal(xkey, (2, 3, 16, 16), jnp.float32)

    # Production bf16 path.
    out = jax.block_until_ready(detail_branch_forward(x, params))
    assert out.shape == (2, 128, 2, 2), out.shape  # /8 spatial, 128 channels
    ref = jax.block_until_ready(detail_branch_reference(x, params, jnp.bfloat16))
    err = float(jnp.max(jnp.abs(out - ref)))
    assert jnp.allclose(out, ref, atol=5e-2, rtol=5e-2), err

    # Stricter structural check with an f32 compute path.
    out_f32 = jax.block_until_ready(
        detail_branch_forward(x, params, compute_dtype=jnp.float32))
    ref_f32 = jax.block_until_ready(detail_branch_reference(x, params, jnp.float32))
    err_f32 = float(jnp.max(jnp.abs(out_f32 - ref_f32)))
    assert jnp.allclose(out_f32, ref_f32, atol=1e-3, rtol=1e-3), err_f32

    # Larger input with small tile overrides so the fused stride-1 path runs
    # multiple M-tiles per image (exercises the double-buffered strip prefetch)
    # and the im2col path runs multiple tiles too; also covers batch=1.
    x2 = jax.random.normal(xkey2, (1, 3, 128, 64), jnp.float32)
    out2 = jax.block_until_ready(
        detail_branch_forward(x2, params, fused_tm=512, im2col_tm=512))
    assert out2.shape == (1, 128, 16, 8), out2.shape
    ref2 = jax.block_until_ready(detail_branch_reference(x2, params, jnp.bfloat16))
    err2 = float(jnp.max(jnp.abs(out2 - ref2)))
    assert jnp.allclose(out2, ref2, atol=5e-2, rtol=5e-2), err2

    print("KERNEL_OK")
</pallas_src>

<mosaic_0001>
module attributes {stable_mosaic.version = 11 : i64} {
  func.func @_matmul_relu_bn_kernel(%arg0: i32, %arg1: i32, %arg2: memref<1x32x128xbf16, #tpu.memory_space<vmem>>, %arg3: memref<64x32xbf16, #tpu.memory_space<vmem>>, %arg4: memref<2x64x1xf32, #tpu.memory_space<vmem>>, %arg5: memref<1x64x128xbf16, #tpu.memory_space<vmem>>) attributes {dimension_semantics = [#tpu.dimension_semantics<parallel>, #tpu.dimension_semantics<parallel>], iteration_bounds = array<i64: 2, 1>, scalar_prefetch = 0 : i64, scratch_operands = 0 : i64, tpu.core_type = #tpu.core_type<tc>, window_params = [{transform_indices = @transform_0, window_bounds = array<i64: 1, 32, 128>}, {pipeline_mode = #tpu.pipeline_mode<synchronous>, transform_indices = @transform_1, window_bounds = array<i64: 64, 32>}, {pipeline_mode = #tpu.pipeline_mode<synchronous>, transform_indices = @transform_2, window_bounds = array<i64: 2, 64, 1>}, {transform_indices = @transform_3, window_bounds = array<i64: 1, 64, 128>}]} {
    %c0 = arith.constant 0 : index
    %c0_0 = arith.constant 0 : index
    %0 = vector.load %arg3[%c0, %c0_0] : memref<64x32xbf16, #tpu.memory_space<vmem>>, vector<64x32xbf16>
    %c0_1 = arith.constant 0 : index
    %c0_2 = arith.constant 0 : index
    %c0_3 = arith.constant 0 : index
    %1 = vector.load %arg2[%c0_1, %c0_2, %c0_3] : memref<1x32x128xbf16, #tpu.memory_space<vmem>>, vector<1x32x128xbf16>
    %2 = vector.shape_cast %1 : vector<1x32x128xbf16> to vector<32x128xbf16>
    %cst = arith.constant dense<0.000000e+00> : vector<64x128xf32>
    %3 = tpu.matmul %0, %2, %cst {dimension_numbers = #tpu.dot_dimension_numbers<[1], [0], [0], [1], [0, 0, 1, 1], [], []>} : vector<64x32xbf16>, vector<32x128xbf16>, vector<64x128xf32> -> vector<64x128xf32>
    %cst_4 = arith.constant 0.000000e+00 : f32
    %4 = vector.broadcast %cst_4 : f32 to vector<64x128xf32>
    %5 = arith.maximumf %3, %4 : vector<64x128xf32>
    %c0_5 = arith.constant 0 : index
    %c0_6 = arith.constant 0 : index
    %c0_7 = arith.constant 0 : index
    %6 = vector.load %arg4[%c0_5, %c0_6, %c0_7] : memref<2x64x1xf32, #tpu.memory_space<vmem>>, vector<1x64x1xf32>
    %7 = vector.shape_cast %6 : vector<1x64x1xf32> to vector<64x1xf32>
    %8 = vector.broadcast %7 : vector<64x1xf32> to vector<64x128xf32>
    %9 = arith.mulf %5, %8 : vector<64x128xf32>
    %c1 = arith.constant 1 : index
    %c0_8 = arith.constant 0 : index
    %c0_9 = arith.constant 0 : index
    %10 = vector.load %arg4[%c1, %c0_8, %c0_9] : memref<2x64x1xf32, #tpu.memory_space<vmem>>, vector<1x64x1xf32>
    %11 = vector.shape_cast %10 : vector<1x64x1xf32> to vector<64x1xf32>
    %12 = vector.broadcast %11 : vector<64x1xf32> to vector<64x128xf32>
    %13 = arith.addf %9, %12 : vector<64x128xf32>
    %14 = arith.truncf %13 : vector<64x128xf32> to vector<64x128xbf16>
    %c0_10 = arith.constant 0 : index
    %c0_11 = arith.constant 0 : index
    %c0_12 = arith.constant 0 : index
    %15 = vector.load %arg5[%c0_10, %c0_11, %c0_12] : memref<1x64x128xbf16, #tpu.memory_space<vmem>>, vector<1x64x128xbf16>
    %16 = vector.shape_cast %15 : vector<1x64x128xbf16> to vector<64x128xbf16>
    %17 = vector.shape_cast %14 : vector<64x128xbf16> to vector<1x64x128xbf16>
    tpu.vector_store %arg5[%c0_10, %c0_11, %c0_12], %17 {strides = array<i32>} : memref<1x64x128xbf16, #tpu.memory_space<vmem>>, vector<1x64x128xbf16>,
    return
  }
  func.func @transform_0(%arg0: i32, %arg1: i32) -> (i32, i32, i32) {
    %c0_i32 = arith.constant 0 : i32
    %c0_i32_0 = arith.constant 0 : i32
    return %arg0, %c0_i32, %arg1 : i32, i32, i32
  }
  func.func @transform_1(%arg0: i32, %arg1: i32) -> (i32, i32) {
    %c0_i32 = arith.constant 0 : i32
    %c0_i32_0 = arith.constant 0 : i32
    %c0_i32_1 = arith.constant 0 : i32
    return %c0_i32, %c0_i32_0 : i32, i32
  }
  func.func @transform_2(%arg0: i32, %arg1: i32) -> (i32, i32, i32) {
    %c0_i32 = arith.constant 0 : i32
    %c0_i32_0 = arith.constant 0 : i32
    %c0_i32_1 = arith.constant 0 : i32
    %c0_i32_2 = arith.constant 0 : i32
    return %c0_i32, %c0_i32_0, %c0_i32_1 : i32, i32, i32
  }
  func.func @transform_3(%arg0: i32, %arg1: i32) -> (i32, i32, i32) {
    %c0_i32 = arith.constant 0 : i32
    %c0_i32_0 = arith.constant 0 : i32
    return %arg0, %c0_i32, %arg1 : i32, i32, i32
  }
}

</mosaic_0001>

<llo_original>
// kernel: tpu_custom_call.1
$region0: #{tpu_custom_call.1}
  #allocation0 [shape = 'u32[]', space=smem, size = 0x4, offset = 0x4, fixed_abs, tag = 'smem constant byte address 0x4 - core index']
  #allocation1 [shape = 'u32[144,128]{1,0:T(1,128)}', space=vmem, size = 0x12000, scoped, tag = 'internal scratch']
  %s0 = inlined_call_operand.vmem [shape: bf16[2,32,128], index: 0, kind: input, shape index: {}]
  %s1 = inlined_call_operand.vmem [shape: bf16[64,32], index: 1, kind: input, shape index: {}]
  %s2 = inlined_call_operand.vmem [shape: f32[2,64,1], index: 2, kind: input, shape index: {}]
  %s3 = inlined_call_operand.hbm [shape: bf16[2,64,128], index: 3, kind: output, shape index: {}]
  %s4 = sld [smem:[#allocation0]]
  $region45: #{tpu_custom_call.1} parent=0
    _
  %s6 = ssub.s32 1, %s4
  %s7 = scalar_select 0, %s6, %s4
  $region1: #{tpu_custom_call.1} parent=0
    #allocation2 [shape = 'u8[32768]{0}', space=vmem, size = 0x8000, scoped, tag = 'output window, operand 0']
    #allocation3 [shape = 's32[2]{0}', space=sflag, size = 0x8, scoped, tag = 'scoped memory for tpu_custom_call.1']
    %8 = vsyncpa [#allocation3], 0
    %s9 = scalar_lea.sflag [#allocation3], 1
    %10 = vsyncpa %s9, 0
    loop: start=0, step=1, limit=4
    $region2: #{tpu_custom_call.1} parent=1 // loop_pre_header
      _
    $region3: #{tpu_custom_call.1} parent=1 // loop_header
      %s12 = sphi 0, %s16
      %p13 = scmp.ge.s32.totalorder %s12, 4
      %s19 = sphi 0, %s31
      %s20 = sphi 0, %s27
      %s21 = sphi 0, %s19
      %s22 = sphi 0, %s20
      %s23 = sphi 0, %s21
      %s24 = sphi 0, %s22
      %s36 = sphi 0, %s38
      %s39 = sphi 0, %s36
      %s40 = sphi 0, %s39
      %s56 = sphi 0, %s40
      %s60 = sphi 0, %s60
      %s62 = sphi 0, %s60
      %s63 = sphi 0, %s62
      %s77 = sphi 0, %s63
      %s81 = sphi 0, %s81
      %s83 = sphi 0, %s81
      %s84 = sphi 0, %s83
      %s98 = sphi 0, %s84
      %s106 = sphi 0, %s108
      %s109 = sphi 0, %s106
      %s110 = sphi 0, %s109
      %s126 = sphi 0, %s110
    $region4: #{tpu_custom_call.1} parent=1 // loop_header_branch
      %15 = sbr.rel (%p13) target = $region8
    $region5: #{tpu_custom_call.1} parent=1 // loop_body
      %s17 = ssub.s32 %s12, 1
      %s18 = ssub.s32 %s12, 2
      %s25 = sadd.s32 1, %s20
      %p26 = scmp.ge.s32.totalorder %s25, 1
      %s27 = scalar_select %p26, 0, %s25
      %s28 = sadd.s32 1, %s19
      %s29 = scalar_select %p26, %s28, %s19
      %p30 = scmp.ge.s32.totalorder %s29, 2
      %s31 = scalar_select %p30, 0, %s29
      %s32 = ssub.s32 %s19, %s31
      %s33 = ssub.s32 %s20, %s27
      %s34 = sor.u32 %s32, %s33
      %p35 = scmp.eq.s32.totalorder %s34, 0
      %s37 = sadd.s32 %s36, 1
      %s38 = scalar_select %p35, %s36, %s37
      %p41 = pneg %p35
      %p42 = scmp.eq.s32.totalorder %s12, 1
      %p43 = por %p41, %p42
      %p44 = scmp.ne.s32.totalorder %s36, %s39
      %p45 = scmp.eq.s32.totalorder %s12, 0
      %p46 = por %p44, %p45
      %p47 = scmp.ne.s32.totalorder %s36, %s39
      %p48 = scmp.eq.s32.totalorder %s17, 1
      %p49 = por %p47, %p48
      %p50 = scmp.ne.s32.totalorder %s39, %s40
      %p51 = scmp.eq.s32.totalorder %s17, 0
      %p52 = por %p50, %p51
      %p53 = scmp.ne.s32.totalorder %s39, %s40
      %p54 = scmp.eq.s32.totalorder %s18, 1
      %p55 = por %p53, %p54
      %p57 = scmp.ne.s32.totalorder %s40, %s56
      %p58 = scmp.eq.s32.totalorder %s18, 0
      %p59 = por %p57, %p58
      %s61 = sadd.s32 %s60, 1
      %p64 = scmp.eq.s32.totalorder %s12, 1
      %p65 = scmp.ne.s32.totalorder %s60, %s62
      %p66 = scmp.eq.s32.totalorder %s12, 0
      %p67 = por %p65, %p66
      %p68 = scmp.ne.s32.totalorder %s60, %s62
      %p69 = scmp.eq.s32.totalorder %s17, 1
      %p70 = por %p68, %p69
      %p71 = scmp.ne.s32.totalorder %s62, %s63
      %p72 = scmp.eq.s32.totalorder %s17, 0
      %p73 = por %p71, %p72
      %p74 = scmp.ne.s32.totalorder %s62, %s63
      %p75 = scmp.eq.s32.totalorder %s18, 1
      %p76 = por %p74, %p75
      %p78 = scmp.ne.s32.totalorder %s63, %s77
      %p79 = scmp.eq.s32.totalorder %s18, 0
      %p80 = por %p78, %p79
      %s82 = sadd.s32 %s81, 1
      %p85 = scmp.eq.s32.totalorder %s12, 1
      %p86 = scmp.ne.s32.totalorder %s81, %s83
      %p87 = scmp.eq.s32.totalorder %s12, 0
      %p88 = por %p86, %p87
      %p89 = scmp.ne.s32.totalorder %s81, %s83
      %p90 = scmp.eq.s32.totalorder %s17, 1
      %p91 = por %p89, %p90
      %p92 = scmp.ne.s32.totalorder %s83, %s84
      %p93 = scmp.eq.s32.totalorder %s17, 0
      %p94 = por %p92, %p93
      %p95 = scmp.ne.s32.totalorder %s83, %s84
      %p96 = scmp.eq.s32.totalorder %s18, 1
      %p97 = por %p95, %p96
      %p99 = scmp.ne.s32.totalorder %s84, %s98
      %p100 = scmp.eq.s32.totalorder %s18, 0
      %p101 = por %p99, %p100
      %s102 = ssub.s32 %s19, %s31
      %s103 = ssub.s32 %s20, %s27
      %s104 = sor.u32 %s102, %s103
      %p105 = scmp.eq.s32.totalorder %s104, 0
      %s107 = sadd.s32 %s106, 1
      %s108 = scalar_select %p105, %s106, %s107
      %p111 = pneg %p105
      %p112 = scmp.eq.s32.totalorder %s12, 1
      %p113 = por %p111, %p112
      %p114 = scmp.ne.s32.totalorder %s106, %s109
      %p115 = scmp.eq.s32.totalorder %s12, 0
      %p116 = por %p114, %p115
      %p117 = scmp.ne.s32.totalorder %s106, %s109
      %p118 = scmp.eq.s32.totalorder %s17, 1
      %p119 = por %p117, %p118
      %p120 = scmp.ne.s32.totalorder %s109, %s110
      %p121 = scmp.eq.s32.totalorder %s17, 0
      %p122 = por %p120, %p121
      %p123 = scmp.ne.s32.totalorder %s109, %s110
      %p124 = scmp.eq.s32.totalorder %s18, 1
      %p125 = por %p123, %p124
      %p127 = scmp.ne.s32.totalorder %s110, %s126
      %p128 = scmp.eq.s32.totalorder %s18, 0
      %p129 = por %p127, %p128
      %p130 = scmp.le.s32.totalorder 1, %s12
      %p131 = scmp.lt.s32.totalorder %s12, 3
      %p132 = pnand %p130, %p131
      %p133 = pneg %p132
      // Predicated region
      $region9: #{tpu_custom_call.1} parent=5 // pred_check
        _
      $region10: #{tpu_custom_call.1} parent=5 // pred_check_branch
        %135 = sbr.rel (%p132) target = $region12
      $region11: #{tpu_custom_call.1} parent=5 // pred_region
        %s136 = ssub.s32 %s12, 1
        // Predicated region
        $region13: #{tpu_custom_call.1} parent=11 // pred_check
          %p137 = pneg %p73
        $region14: #{tpu_custom_call.1} parent=11 // pred_check_branch
          %139 = sbr.rel (%p137) target = $region16
        $region15: #{tpu_custom_call.1} parent=11 // pred_region
          _
        $region16: #{tpu_custom_call.1} parent=11 // pred_fallthru
          _
        // Predicated region
        $region17: #{tpu_custom_call.1} parent=11 // pred_check
          %p140 = pneg %p94
        $region18: #{tpu_custom_call.1} parent=11 // pred_check_branch
          %142 = sbr.rel (%p140) target = $region20
        $region19: #{tpu_custom_call.1} parent=11 // pred_region
          _
        $region20: #{tpu_custom_call.1} parent=11 // pred_fallthru
          _
      $region12: #{tpu_custom_call.1} parent=5 // pred_fallthru
        _
      %p143 = scmp.lt.s32.totalorder %s12, 2
      // Predicated region
      $region21: #{tpu_custom_call.1} parent=5 // pred_check
        %p144 = pneg %p143
      $region22: #{tpu_custom_call.1} parent=5 // pred_check_branch
        %146 = sbr.rel (%p144) target = $region24
      $region23: #{tpu_custom_call.1} parent=5 // pred_region
        // Predicated region
        $region25: #{tpu_custom_call.1} parent=23 // pred_check
          %p147 = pneg %p46
        $region26: #{tpu_custom_call.1} parent=23 // pred_check_branch
          %149 = sbr.rel (%p147) target = $region28
        $region27: #{tpu_custom_call.1} parent=23 // pred_region
          %p150 = scmp.lt.s32.totalorder %s19, 1
          %s151 = scalar_select %p150, %s19, 1
          %p152 = scmp.lt.s32.totalorder %s20, 0
          %s153 = scalar_select %p152, %s20, 0
          %s154 = smul.addr %s151, 4
          %s155 = sadd.s32 %s153, %s154
          %s156 = smul.addr %s155, 4
          %s157 = scalar_lea.vmem %s0, %s156
        $region28: #{tpu_custom_call.1} parent=23 // pred_fallthru
          _
      $region24: #{tpu_custom_call.1} parent=5 // pred_fallthru
        _
      %p158 = scmp.le.s32.totalorder 1, %s12
      %p159 = scmp.lt.s32.totalorder %s12, 3
      %p160 = pnand %p158, %p159
      %p161 = pneg %p160
      // Predicated region
      $region29: #{tpu_custom_call.1} parent=5 // pred_check
        _
      $region30: #{tpu_custom_call.1} parent=5 // pred_check_branch
        %163 = sbr.rel (%p160) target = $region32
      $region31: #{tpu_custom_call.1} parent=5 // pred_region
        %s164 = ssub.s32 %s12, 1
        %p165 = scmp.lt.s32.totalorder %s21, 1
        %s166 = scalar_select %p165, %s21, 1
        %p167 = scmp.lt.s32.totalorder %s22, 0
        %s168 = scalar_select %p167, %s22, 0
        %s169 = smul.addr %s166, 4
        %s170 = sadd.s32 %s168, %s169
        %s171 = smul.addr %s170, 4
        %s172 = scalar_lea.vmem %s0, %s171
        %p173 = pneg %p52
        %p174 = pneg %p49
        %p175 = pneg %p73
        %p176 = pneg %p70
        %p177 = pneg %p94
        %p178 = pneg %p91
        %p179 = pneg %p122
        %p180 = pneg %p119
        %s181 = sand.u32 %s109, 1
        %s182 = scalar_lea.sflag [#allocation3], %s181
        %s183 = sand.u32 %s109, 1
        %s184 = smul.addr %s183, 32
        %s185 = scalar_lea.vmem [#allocation2], %s184
        %p186 = scmp.lt.s32.totalorder %s21, 1
        %s187 = scalar_select %p186, %s21, 1
        %p188 = scmp.lt.s32.totalorder %s22, 0
        %s189 = scalar_select %p188, %s22, 0
        %s190 = smul.addr %s187, 4
        %s191 = sadd.s32 %s189, %s190
        %s192 = smul.addr %s191, 4
        %s193 = scalar_lea.vmem %s0, %s192
        %v195 = vld [vmem:[%s1] sm:$0xf]
        %v196 = vld [vmem:[%s1 + $0x4] sm:$0xf]
        %v197 = vld [vmem:[%s1 + $0x8] sm:$0xf]
        %v198 = vld [vmem:[%s1 + $0xc] sm:$0xf]
        %v199 = vld [vmem:[%s1 + $0x10] sm:$0xf]
        %v200 = vld [vmem:[%s1 + $0x14] sm:$0xf]
        %v201 = vld [vmem:[%s1 + $0x18] sm:$0xf]
        %v202 = vld [vmem:[%s1 + $0x1c] sm:$0xf]
        %v203 = vld [vmem:[%s193] sm:$0xf]
        %v204 = vld [vmem:[%s193 + $0x4] sm:$0xf]
        %v205 = vld [vmem:[%s193 + $0x8] sm:$0xf]
        %v206 = vld [vmem:[%s193 + $0xc] sm:$0xf]
        %v215 = vunpack.c.l.b16 %v195
        %v216 = vunpack.c.l.b16 %v196
        %v217 = vunpack.c.l.b16 %v197
        %v218 = vunpack.c.l.b16 %v198
        %v219 = vunpack.c.l.b16 %v199
        %v220 = vunpack.c.l.b16 %v200
        %v221 = vunpack.c.l.b16 %v201
        %v222 = vunpack.c.l.b16 %v202
        %v223 = vpack.c.b16 %v216, %v215
        %v224 = vpack.c.b16 %v218, %v217
        %v225 = vpack.c.b16 %v220, %v219
        %v226 = vpack.c.b16 %v222, %v221
        %v231 = vunpack.c.l.b16 %v203
        %v232 = vunpack.c.l.b16 %v204
        %v233 = vunpack.c.l.b16 %v205
        %v234 = vunpack.c.l.b16 %v206
        %v235 = vpack.c.b16 %v232, %v231
        %v236 = vpack.c.b16 %v234, %v233
        %vm239 = vcmask 261120
        %v241 = vsel %vm239, %v223, 0
        %v244 = vsel %vm239, %v224, 0
        %v247 = vsel %vm239, %v225, 0
        %v250 = vsel %vm239, %v226, 0
        %252 = vmatprep.subr.bf16.mxu0 0
        %253 = vmatpush1.bf16.msra.mxu0 %v235
        %254 = vmatprep.subr.bf16.mxu0 0
        %255 = vmatpush1.bf16.msra.mxu0 %v236
        %256 = vmatprep.subr.bf16.mxu0 0
        %257 = vmatpush1.bf16.msra.mxu0 0
        %258 = vmatprep.subr.bf16.mxu0 0
        %259 = vmatpush1.bf16.msra.mxu0 0
        %260 = vmatprep.subr.bf16.mxu0 0
        %261 = vmatpush1.bf16.msra.mxu0 0
        %262 = vmatprep.subr.bf16.mxu0 0
        %263 = vmatpush1.bf16.msra.mxu0 0
        %264 = vmatprep.subr.bf16.mxu0 0
        %265 = vmatpush1.bf16.msra.mxu0 0
        %266 = vmatprep.subr.bf16.mxu0 0
        %267 = vmatpush1.bf16.msra.mxu0 0
        %268 = vmatprep.subr.bf16.mxu0 0
        %269 = vmatpush1.bf16.msra.mxu0 0
        %270 = vmatprep.subr.bf16.mxu0 0
        %271 = vmatpush1.bf16.msra.mxu0 0
        %272 = vmatprep.subr.bf16.mxu0 0
        %273 = vmatpush1.bf16.msra.mxu0 0
        %274 = vmatprep.subr.bf16.mxu0 0
        %275 = vmatpush1.bf16.msra.mxu0 0
        %276 = vmatprep.subr.bf16.mxu0 0
        %277 = vmatpush1.bf16.msra.mxu0 0
        %278 = vmatprep.subr.bf16.mxu0 0
        %279 = vmatpush1.bf16.msra.mxu0 0
        %280 = vmatprep.subr.bf16.mxu0 0
        %281 = vmatpush1.bf16.msra.mxu0 0
        %282 = vmatprep.subr.bf16.mxu0 0
        %283 = vmatpush1.bf16.msra.mxu0 0
        %284 = vmatprep.mubr.bf16.mxu0 0
        %285 = vmatmul.mubr.bf16.gmra.mrb[0].mxu0 %v241
        %v286 = vpop.f32.mrb[0].mxu0
        %v287 = vadd.f32 0.0, %v286
        %v288 = vpop.f32.mrb[0].mxu0
        %v289 = vpop.f32.mrb[0].mxu0
        %v290 = vadd.f32 0.0, %v289
        %v291 = vpop.f32.mrb[0].mxu0
        %292 = vmatprep.mubr.bf16.mxu0 0
        %293 = vmatmul.mubr.bf16.gmra.mrb[0].mxu0 %v244
        %v294 = vpop.f32.mrb[0].mxu0
        %v295 = vadd.f32 0.0, %v294
        %v296 = vpop.f32.mrb[0].mxu0
        %v297 = vpop.f32.mrb[0].mxu0
        %v298 = vadd.f32 0.0, %v297
        %v299 = vpop.f32.mrb[0].mxu0
        %300 = vmatprep.mubr.bf16.mxu0 0
        %301 = vmatmul.mubr.bf16.gmra.mrb[0].mxu0 %v247
        %v302 = vpop.f32.mrb[0].mxu0
        %v303 = vadd.f32 0.0, %v302
        %v304 = vpop.f32.mrb[0].mxu0
        %v305 = vpop.f32.mrb[0].mxu0
        %v306 = vadd.f32 0.0, %v305
        %v307 = vpop.f32.mrb[0].mxu0
        %308 = vmatprep.mubr.bf16.mxu0 0
        %309 = vmatmul.mubr.bf16.gmra.mrb[0].mxu0 %v250
        %v310 = vpop.f32.mrb[0].mxu0
        %v311 = vadd.f32 0.0, %v310
        %v312 = vpop.f32.mrb[0].mxu0
        %v313 = vpop.f32.mrb[0].mxu0
        %v314 = vadd.f32 0.0, %v313
        %v315 = vpop.f32.mrb[0].mxu0
        %316 = vdwg.mxu0
        %v317 = vmax.f32 %v287, 0.0
        %v318 = vmax.f32 %v290, 0.0
        %v319 = vmax.f32 %v295, 0.0
        %v320 = vmax.f32 %v298, 0.0
        %v321 = vmax.f32 %v303, 0.0
        %v322 = vmax.f32 %v306, 0.0
        %v323 = vmax.f32 %v311, 0.0
        %v324 = vmax.f32 %v314, 0.0
        %v325 = vld [vmem:[%s2] sm:$0xff]
        %v326 = vld [vmem:[%s2 + $0x8] sm:$0xff]
        %v327 = vld [vmem:[%s2 + $0x10] sm:$0xff]
        %v328 = vld [vmem:[%s2 + $0x18] sm:$0xff]
        %v329 = vld [vmem:[%s2 + $0x20] sm:$0xff]
        %v330 = vld [vmem:[%s2 + $0x28] sm:$0xff]
        %v331 = vld [vmem:[%s2 + $0x30] sm:$0xff]
        %v332 = vld [vmem:[%s2 + $0x38] sm:$0xff]
        %334 = vset.pattern.permute.xlu0 0
        %335 = vperm.xlu0 %334, %v325
        %v336 = vpop.permute.xlu0 %335
        %339 = vset.pattern.permute.xlu0 0
        %340 = vperm.xlu0 %339, %v326
        %v341 = vpop.permute.xlu0 %340
        %344 = vset.pattern.permute.xlu0 0
        %345 = vperm.xlu0 %344, %v327
        %v346 = vpop.permute.xlu0 %345
        %349 = vset.pattern.permute.xlu0 0
        %350 = vperm.xlu0 %349, %v328
        %v351 = vpop.permute.xlu0 %350
        %354 = vset.pattern.permute.xlu0 0
        %355 = vperm.xlu0 %354, %v329
        %v356 = vpop.permute.xlu0 %355
        %359 = vset.pattern.permute.xlu0 0
        %360 = vperm.xlu0 %359, %v330
        %v361 = vpop.permute.xlu0 %360
        %364 = vset.pattern.permute.xlu0 0
        %365 = vperm.xlu0 %364, %v331
        %v366 = vpop.permute.xlu0 %365
        %369 = vset.pattern.permute.xlu0 0
        %370 = vperm.xlu0 %369, %v332
        %v371 = vpop.permute.xlu0 %370
        %v373 = vmul.f32 %v317, %v336
        %v374 = vmul.f32 %v318, %v341
        %v375 = vmul.f32 %v319, %v346
        %v376 = vmul.f32 %v320, %v351
        %v377 = vmul.f32 %v321, %v356
        %v378 = vmul.f32 %v322, %v361
        %v379 = vmul.f32 %v323, %v366
        %v380 = vmul.f32 %v324, %v371
        %s381 = scalar_lea.vmem %s2, 64
        %v382 = vld [vmem:[%s381] sm:$0xff]
        %v383 = vld [vmem:[%s381 + $0x8] sm:$0xff]
        %v384 = vld [vmem:[%s381 + $0x10] sm:$0xff]
        %v385 = vld [vmem:[%s381 + $0x18] sm:$0xff]
        %v386 = vld [vmem:[%s381 + $0x20] sm:$0xff]
        %v387 = vld [vmem:[%s381 + $0x28] sm:$0xff]
        %v388 = vld [vmem:[%s381 + $0x30] sm:$0xff]
        %v389 = vld [vmem:[%s381 + $0x38] sm:$0xff]
        %391 = vset.pattern.permute.xlu0 0
        %392 = vperm.xlu0 %391, %v382
        %v393 = vpop.permute.xlu0 %392
        %396 = vset.pattern.permute.xlu0 0
        %397 = vperm.xlu0 %396, %v383
        %v398 = vpop.permute.xlu0 %397
        %401 = vset.pattern.permute.xlu0 0
        %402 = vperm.xlu0 %401, %v384
        %v403 = vpop.permute.xlu0 %402
        %406 = vset.pattern.permute.xlu0 0
        %407 = vperm.xlu0 %406, %v385
        %v408 = vpop.permute.xlu0 %407
        %411 = vset.pattern.permute.xlu0 0
        %412 = vperm.xlu0 %411, %v386
        %v413 = vpop.permute.xlu0 %412
        %416 = vset.pattern.permute.xlu0 0
        %417 = vperm.xlu0 %416, %v387
        %v418 = vpop.permute.xlu0 %417
        %421 = vset.pattern.permute.xlu0 0
        %422 = vperm.xlu0 %421, %v388
        %v423 = vpop.permute.xlu0 %422
        %426 = vset.pattern.permute.xlu0 0
        %427 = vperm.xlu0 %426, %v389
        %v428 = vpop.permute.xlu0 %427
        %v430 = vadd.f32 %v373, %v393
        %v431 = vadd.f32 %v374, %v398
        %v432 = vadd.f32 %v375, %v403
        %v433 = vadd.f32 %v376, %v408
        %v434 = vadd.f32 %v377, %v413
        %v435 = vadd.f32 %v378, %v418
        %v436 = vadd.f32 %v379, %v423
        %v437 = vadd.f32 %v380, %v428
        %v438 = vpack.c.bf16 %v431, %v430
        %v439 = vpack.c.bf16 %v433, %v432
        %v440 = vpack.c.bf16 %v435, %v434
        %v441 = vpack.c.bf16 %v437, %v436
        %v446 = vunpack.c.l.b16 %v438
        %v447 = vunpack.c.h.b16 %v438
        %v448 = vunpack.c.l.b16 %v439
        %v449 = vunpack.c.h.b16 %v439
        %v450 = vunpack.c.l.b16 %v440
        %v451 = vunpack.c.h.b16 %v440
        %v452 = vunpack.c.l.b16 %v441
        %v453 = vunpack.c.h.b16 %v441
        %v454 = vpack.c.b16 %v446, %v446
        %v455 = vpack.c.b16 %v447, %v447
        %v456 = vpack.c.b16 %v448, %v448
        %v457 = vpack.c.b16 %v449, %v449
        %v458 = vpack.c.b16 %v450, %v450
        %v459 = vpack.c.b16 %v451, %v451
        %v460 = vpack.c.b16 %v452, %v452
        %v461 = vpack.c.b16 %v453, %v453
        %470 = vst [vmem:[%s185] sm:$0xf] %v454
        %471 = vst [vmem:[%s185 + $0x4] sm:$0xf] %v455
        %472 = vst [vmem:[%s185 + $0x8] sm:$0xf] %v456
        %473 = vst [vmem:[%s185 + $0xc] sm:$0xf] %v457
        %474 = vst [vmem:[%s185 + $0x10] sm:$0xf] %v458
        %475 = vst [vmem:[%s185 + $0x14] sm:$0xf] %v459
        %476 = vst [vmem:[%s185 + $0x18] sm:$0xf] %v460
        %477 = vst [vmem:[%s185 + $0x1c] sm:$0xf] %v461
        %s478 = sand.u32 %s109, 1
        %s479 = scalar_lea.sflag [#allocation3], %s478
        %s480 = sand.u32 %s109, 1
        %s481 = smul.addr %s480, 32
        %s482 = scalar_lea.vmem [#allocation2], %s481
        // Predicated region
        $region33: #{tpu_custom_call.1} parent=31 // pred_check
          %p483 = pneg %p119
        $region34: #{tpu_custom_call.1} parent=31 // pred_check_branch
          %485 = sbr.rel (%p483) target = $region36
        $region35: #{tpu_custom_call.1} parent=31 // pred_region
          %s487 = ssub.s32 512, 512
          %488 = vsyncadd %s479, %s487
          %s489 = smul.addr %s21, 8
          %s490 = sadd.s32 %s22, %s489
          %s491 = smul.addr %s490, 64
          %s492 = scalar_lea.hbm %s3, %s491
          %s493 = sshll.u32 %s482, 4
          %s494 = int_to_ptr.vmem [resolvable:$true] %s493
          %499 = dma.vmem_to_hbm [thread:$0]  %s494, 512, %s492, %s479, 64, 64, 4
        $region36: #{tpu_custom_call.1} parent=31 // pred_fallthru
          _
      $region32: #{tpu_custom_call.1} parent=5 // pred_fallthru
        _
      %p500 = scmp.le.s32.totalorder 2, %s12
      // Predicated region
      $region37: #{tpu_custom_call.1} parent=5 // pred_check
        %p501 = pneg %p500
      $region38: #{tpu_custom_call.1} parent=5 // pred_check_branch
        %503 = sbr.rel (%p501) target = $region40
      $region39: #{tpu_custom_call.1} parent=5 // pred_region
        %s504 = ssub.s32 %s12, 2
        // Predicated region
        $region41: #{tpu_custom_call.1} parent=39 // pred_check
          %p505 = pneg %p125
        $region42: #{tpu_custom_call.1} parent=39 // pred_check_branch
          %507 = sbr.rel (%p505) target = $region44
        $region43: #{tpu_custom_call.1} parent=39 // pred_region
          %s508 = sand.u32 %s110, 1
          %s509 = scalar_lea.sflag [#allocation3], %s508
          %s510 = sand.u32 %s110, 1
          %s511 = smul.addr %s510, 32
          %s512 = scalar_lea.vmem [#allocation2], %s511
          %513 = dma.done %s509, 512
        $region44: #{tpu_custom_call.1} parent=39 // pred_fallthru
          _
      $region40: #{tpu_custom_call.1} parent=5 // pred_fallthru
        _
    $region6: #{tpu_custom_call.1} parent=1 // loop_footer
      %s16 = sadd.s32 1, %s12
    $region7: #{tpu_custom_call.1} parent=1 // loop_footer_branch
      %11 = sbr.rel target = $region3
    $region8: #{tpu_custom_call.1} parent=1 // loop_exit
      _
    %514 = vsyncpa [#allocation3], 1
    %s515 = scalar_lea.sflag [#allocation3], 1
    %516 = vsyncpa %s515, 1

</llo_original>
